<compile_context>
chip_gen: v7x
topology: tpu7x:2x2x1
jax: 0.10.0
libtpu: 0.0.40
codegen_flags: <defaults>
</compile_context>

<pallas_src>
import math

import numpy as np

import jax
import jax.numpy as jnp
from jax.experimental import pallas as pl
from jax.experimental.pallas import tpu as pltpu


# --------------------------------------------------------------------------
# Interpolation matrices (host-side glue, built once per call in numpy).
# --------------------------------------------------------------------------
def _interp_matrix(in_size, out_size, mode):
    """(out_size, in_size) f32 matrix M so that  y = M @ x  upsamples one axis,
    matching torch.nn.Upsample semantics (legacy 'nearest'; align_corners=False
    for the linear family)."""
    if mode == "nearest":
        src = np.minimum(
            np.floor(np.arange(out_size) * (in_size / out_size)).astype(np.int64),
            in_size - 1,
        )
        m = np.zeros((out_size, in_size), np.float32)
        m[np.arange(out_size), src] = 1.0
        return m
    if mode in ("linear", "bilinear", "trilinear"):
        scale = in_size / out_size
        src = np.clip((np.arange(out_size) + 0.5) * scale - 0.5, 0.0, in_size - 1)
        lo = np.floor(src).astype(np.int64)
        hi = np.minimum(lo + 1, in_size - 1)
        frac = (src - lo).astype(np.float32)
        m = np.zeros((out_size, in_size), np.float32)
        m[np.arange(out_size), lo] += 1.0 - frac
        m[np.arange(out_size), hi] += frac
        return m
    # TODO(synk): 'bicubic' / 'area' / 'nearest-exact' modes not implemented.
    raise NotImplementedError(f"Unsupported upsample mode: {mode!r}")


# --------------------------------------------------------------------------
# Pallas kernel: one (image, channel-block) tile -> two MXU matmuls.
# --------------------------------------------------------------------------
def _upsample_kernel(x_ref, sh_ref, swt_ref, o_ref):
    # x_ref  : (C_BLK, H, W)     channel block of one image
    # sh_ref : (OH, H)           H-axis interpolation matrix (VMEM-resident)
    # swt_ref: (W, OW)           W-axis interpolation matrix (VMEM-resident)
    # o_ref  : (C_BLK, OH, OW)   output tile (exact OW, no lane padding)
    c_blk, h, w = x_ref.shape
    oh = sh_ref.shape[0]
    ow = swt_ref.shape[1]

    x = x_ref[...]
    if x.dtype != swt_ref.dtype:
        # TODO(synk): integer inputs are upsampled in f32 and truncated on the
        # final cast (torch requires float for the linear modes anyway).
        x = x.astype(swt_ref.dtype)

    # W-pass first -> lane-dense (., OW) intermediate.  One big MXU matmul over
    # all channels via the free (C_BLK, H, W) -> (C_BLK*H, W) collapse.
    t = jnp.dot(x.reshape(c_blk * h, w), swt_ref[...],
                preferred_element_type=jnp.float32)              # (C_BLK*H, OW)
    t = t.reshape(c_blk, h, ow).astype(sh_ref.dtype)

    # H-pass: batched per-channel (OH, H) @ (H, OW), Sh broadcast over channels.
    sh_b = jnp.broadcast_to(sh_ref[...], (c_blk, oh, h))
    y = jnp.einsum("coh,chk->cok", sh_b, t,
                   preferred_element_type=jnp.float32)           # (C_BLK, OH, OW)

    # TODO(synk): for 'nearest' with integer scale factors a pure repeat
    # (non-MXU) fast path would be slightly cheaper; MXU path kept for all
    # modes for simplicity/robustness.
    o_ref[...] = y.astype(o_ref.dtype)


def _choose_c_block(n, c, h, w, oh, ow, x_itemsize, p_itemsize,
                    vmem_budget=16 * 1024 * 1024, min_steps=16):
    """Largest channel block that (a) keeps per-step VMEM under a budget safe
    on every TPU generation and (b) leaves >= ~min_steps grid steps for the two
    v7x TensorCores + pipelining."""
    per_c = (2 * h * w * x_itemsize        # input tile, double-buffered
             + 2 * oh * ow * x_itemsize    # output tile, double-buffered
             + h * ow * 4                  # f32 W-pass intermediate
             + oh * h * p_itemsize         # broadcast Sh per channel
             + oh * ow * 4)                # f32 H-pass result before cast
    resident = 2 * (oh * h + w * ow) * p_itemsize   # interpolation matrices
    budget = max(vmem_budget - resident, per_c)
    c_budget = max(1, budget // per_c)

    want_steps = min(min_steps, n * c)
    c_steps = max(1, math.ceil(c / max(1, math.ceil(want_steps / max(1, n)))))
    return int(max(1, min(c, c_budget, c_steps)))


def upsample_pallas(x, size, mode="nearest"):
    """nn.Upsample(size=size, mode=mode)(x) for NCHW x, via Pallas."""
    assert x.ndim == 4, "expects NCHW input"  # TODO(synk): 3-D/5-D inputs not handled
    n, c, h, w = x.shape
    if isinstance(size, (tuple, list)):
        oh, ow = int(size[0]), int(size[1])
    else:
        oh = ow = int(size)

    # bf16 matrices when x is bf16 (native-rate MXU); f32 otherwise.
    param_dtype = jnp.bfloat16 if x.dtype == jnp.dtype(jnp.bfloat16) else jnp.float32
    sh = jnp.asarray(_interp_matrix(h, oh, mode), dtype=param_dtype)      # (OH, H)
    swt = jnp.asarray(_interp_matrix(w, ow, mode).T, dtype=param_dtype)   # (W, OW)

    x_isz = np.dtype(x.dtype).itemsize
    p_isz = np.dtype(param_dtype).itemsize
    c_blk = _choose_c_block(n, c, h, w, oh, ow, x_isz, p_isz)

    grid = (n, pl.cdiv(c, c_blk))

    out = pl.pallas_call(
        _upsample_kernel,
        out_shape=jax.ShapeDtypeStruct((n, c, oh, ow), x.dtype),
        grid_spec=pltpu.PrefetchScalarGridSpec(
            num_scalar_prefetch=0,
            grid=grid,
            in_specs=[
                # leading N dim squeezed: kernel sees (C_BLK, H, W)
                pl.BlockSpec((None, c_blk, h, w), lambda i, j: (i, j, 0, 0)),
                # interpolation matrices: constant block index -> stay resident
                pl.BlockSpec((oh, h), lambda i, j: (0, 0)),
                pl.BlockSpec((w, ow), lambda i, j: (0, 0)),
            ],
            out_specs=pl.BlockSpec((None, c_blk, oh, ow),
                                   lambda i, j: (i, j, 0, 0)),
        ),
        compiler_params=pltpu.CompilerParams(
            dimension_semantics=("parallel", "parallel"),
            # above every generation's scoped default, below v7x's 64 MiB phys.
            vmem_limit_bytes=48 * 1024 * 1024,
        ),
    )(x, sh, swt)
    return out


# --------------------------------------------------------------------------
# JAX/Pallas equivalent of the PyTorch `add_upsample` module.
# --------------------------------------------------------------------------
class AddUpsample:
    def __init__(self, size, mode="nearest"):
        self.size = size
        self.mode = mode

    def __call__(self, x_prob):
        x, prob, var = x_prob
        y = upsample_pallas(x, self.size, self.mode)
        return (y, prob, var)


# --------------------------------------------------------------------------
# Self-test.
# --------------------------------------------------------------------------
if __name__ == "__main__":
    key = jax.random.PRNGKey(0)
    x = jax.random.normal(key, (2, 4, 16, 16), dtype=jnp.float32)

    idx = np.minimum(np.floor(np.arange(32) * (16 / 32)).astype(np.int64), 15)

    # ---- nearest (nn.Upsample default mode), 16x16 -> 32x32 ----------------
    mod_nearest = AddUpsample(size=(32, 32), mode="nearest")
    y, prob, var = mod_nearest((x, None, 1.0))
    y = jax.block_until_ready(y)
    assert y.shape == (2, 4, 32, 32)
    assert prob is None and var == 1.0

    xr = np.asarray(x)
    y_ref = xr[:, :, idx][:, :, :, idx]
    assert np.allclose(np.asarray(y), y_ref, atol=1e-6), "nearest mismatch"

    # ---- bilinear (align_corners=False), 16x16 -> 32x32 --------------------
    mod_bil = AddUpsample(size=(32, 32), mode="bilinear")
    yb, _, _ = mod_bil((x, None, 1.0))
    yb = jax.block_until_ready(yb)
    assert yb.shape == (2, 4, 32, 32)

    def _lin_idx(in_size, out_size):
        s = in_size / out_size
        src = np.clip((np.arange(out_size) + 0.5) * s - 0.5, 0.0, in_size - 1)
        lo = np.floor(src).astype(np.int64)
        hi = np.minimum(lo + 1, in_size - 1)
        frac = (src - lo).astype(np.float32)
        return lo, hi, frac

    lo_h, hi_h, fr_h = _lin_idx(16, 32)
    lo_w, hi_w, fr_w = _lin_idx(16, 32)
    th = (xr[:, :, lo_h] * (1.0 - fr_h)[None, None, :, None]
          + xr[:, :, hi_h] * fr_h[None, None, :, None])
    yb_ref = th[:, :, :, lo_w] * (1.0 - fr_w) + th[:, :, :, hi_w] * fr_w
    assert np.allclose(np.asarray(yb), yb_ref, atol=1e-5, rtol=1e-5), \
        "bilinear mismatch"

    # ---- channel-blocked path (C_BLK > 1), bf16 input, nearest -------------
    x2 = jax.random.normal(jax.random.PRNGKey(1), (2, 16, 16, 16),
                           dtype=jnp.bfloat16)
    y2, _, _ = AddUpsample(size=(32, 32), mode="nearest")((x2, None, None))
    y2 = jax.block_until_ready(y2)
    assert y2.shape == (2, 16, 32, 32) and y2.dtype == jnp.bfloat16
    x2r = np.asarray(x2).astype(np.float32)
    y2_ref = x2r[:, :, idx][:, :, :, idx]
    assert np.array_equal(np.asarray(y2).astype(np.float32), y2_ref), \
        "blocked bf16 nearest mismatch"

    print("KERNEL_OK")
</pallas_src>

<mosaic_0001>
module attributes {stable_mosaic.version = 11 : i64} {
  func.func @_upsample_kernel(%arg0: i32, %arg1: i32, %arg2: memref<1x1x16x16xf32, #tpu.memory_space<vmem>>, %arg3: memref<32x16xf32, #tpu.memory_space<vmem>>, %arg4: memref<16x32xf32, #tpu.memory_space<vmem>>, %arg5: memref<1x1x32x32xf32, #tpu.memory_space<vmem>>) attributes {dimension_semantics = [#tpu.dimension_semantics<parallel>, #tpu.dimension_semantics<parallel>], iteration_bounds = array<i64: 2, 4>, scalar_prefetch = 0 : i64, scratch_operands = 0 : i64, tpu.core_type = #tpu.core_type<tc>, window_params = [{transform_indices = @transform_0, window_bounds = array<i64: 1, 1, 16, 16>}, {pipeline_mode = #tpu.pipeline_mode<synchronous>, transform_indices = @transform_1, window_bounds = array<i64: 32, 16>}, {pipeline_mode = #tpu.pipeline_mode<synchronous>, transform_indices = @transform_2, window_bounds = array<i64: 16, 32>}, {transform_indices = @transform_3, window_bounds = array<i64: 1, 1, 32, 32>}]} {
    %c0 = arith.constant 0 : index
    %c0_0 = arith.constant 0 : index
    %c0_1 = arith.constant 0 : index
    %c0_2 = arith.constant 0 : index
    %0 = vector.load %arg2[%c0, %c0_0, %c0_1, %c0_2] : memref<1x1x16x16xf32, #tpu.memory_space<vmem>>, vector<1x1x16x16xf32>
    %1 = vector.shape_cast %0 : vector<1x1x16x16xf32> to vector<1x16x16xf32>
    %2 = vector.shape_cast %1 : vector<1x16x16xf32> to vector<16x16xf32>
    %c0_3 = arith.constant 0 : index
    %c0_4 = arith.constant 0 : index
    %3 = vector.load %arg4[%c0_3, %c0_4] : memref<16x32xf32, #tpu.memory_space<vmem>>, vector<16x32xf32>
    %cst = arith.constant dense<0.000000e+00> : vector<16x32xf32>
    %4 = tpu.matmul %2, %3, %cst {dimension_numbers = #tpu.dot_dimension_numbers<[1], [0], [0], [1], [0, 0, 1, 1], [], []>} : vector<16x16xf32>, vector<16x32xf32>, vector<16x32xf32> -> vector<16x32xf32>
    %5 = vector.shape_cast %4 : vector<16x32xf32> to vector<1x16x32xf32>
    %c0_5 = arith.constant 0 : index
    %c0_6 = arith.constant 0 : index
    %6 = vector.load %arg3[%c0_5, %c0_6] : memref<32x16xf32, #tpu.memory_space<vmem>>, vector<32x16xf32>
    %7 = vector.shape_cast %6 : vector<32x16xf32> to vector<1x32x16xf32>
    "tpu.trace_start"() <{level = 10 : i32, message = "coh,chk->cok"}> : () -> ()
    %cst_7 = arith.constant dense<0.000000e+00> : vector<1x32x32xf32>
    %8 = tpu.matmul %7, %5, %cst_7 {dimension_numbers = #tpu.dot_dimension_numbers<[2], [1], [1], [2], [0, 0, 0, 1, 1, 2], [0], [0]>} : vector<1x32x16xf32>, vector<1x16x32xf32>, vector<1x32x32xf32> -> vector<1x32x32xf32>
    "tpu.trace_stop"() : () -> ()
    %c0_8 = arith.constant 0 : index
    %c0_9 = arith.constant 0 : index
    %c0_10 = arith.constant 0 : index
    %c0_11 = arith.constant 0 : index
    %9 = vector.load %arg5[%c0_8, %c0_9, %c0_10, %c0_11] : memref<1x1x32x32xf32, #tpu.memory_space<vmem>>, vector<1x1x32x32xf32>
    %10 = vector.shape_cast %9 : vector<1x1x32x32xf32> to vector<1x32x32xf32>
    %11 = vector.shape_cast %8 : vector<1x32x32xf32> to vector<1x1x32x32xf32>
    tpu.vector_store %arg5[%c0_8, %c0_9, %c0_10, %c0_11], %11 {strides = array<i32>} : memref<1x1x32x32xf32, #tpu.memory_space<vmem>>, vector<1x1x32x32xf32>,
    return
  }
  func.func @transform_0(%arg0: i32, %arg1: i32) -> (i32, i32, i32, i32) {
    %c0_i32 = arith.constant 0 : i32
    %c0_i32_0 = arith.constant 0 : i32
    %c0_i32_1 = arith.constant 0 : i32
    return %arg0, %arg1, %c0_i32, %c0_i32_0 : i32, i32, i32, i32
  }
  func.func @transform_1(%arg0: i32, %arg1: i32) -> (i32, i32) {
    %c0_i32 = arith.constant 0 : i32
    %c0_i32_0 = arith.constant 0 : i32
    %c0_i32_1 = arith.constant 0 : i32
    return %c0_i32, %c0_i32_0 : i32, i32
  }
  func.func @transform_2(%arg0: i32, %arg1: i32) -> (i32, i32) {
    %c0_i32 = arith.constant 0 : i32
    %c0_i32_0 = arith.constant 0 : i32
    %c0_i32_1 = arith.constant 0 : i32
    return %c0_i32, %c0_i32_0 : i32, i32
  }
  func.func @transform_3(%arg0: i32, %arg1: i32) -> (i32, i32, i32, i32) {
    %c0_i32 = arith.constant 0 : i32
    %c0_i32_0 = arith.constant 0 : i32
    %c0_i32_1 = arith.constant 0 : i32
    return %arg0, %arg1, %c0_i32, %c0_i32_0 : i32, i32, i32, i32
  }
}

</mosaic_0001>

<llo_original>
// kernel: tpu_custom_call.1
$region0: #{tpu_custom_call.1}
  #allocation0 [shape = 'u32[]', space=smem, size = 0x4, offset = 0x4, fixed_abs, tag = 'smem constant byte address 0x4 - core index']
  #allocation1 [shape = 'u32[144,128]{1,0:T(1,128)}', space=vmem, size = 0x12000, scoped, tag = 'internal scratch']
  %s0 = inlined_call_operand.hbm [shape: f32[2,4,16,16], index: 0, kind: input, shape index: {}]
  %s1 = inlined_call_operand.vmem [shape: f32[32,16], index: 1, kind: input, shape index: {}]
  %s2 = inlined_call_operand.vmem [shape: f32[16,32], index: 2, kind: input, shape index: {}]
  %s3 = inlined_call_operand.hbm [shape: f32[2,4,32,32], index: 3, kind: output, shape index: {}]
  %s4 = sld [smem:[#allocation0]]
  $region49: #{tpu_custom_call.1} parent=0
    _
  %s6 = ssub.s32 1, %s4
  %s7 = scalar_select 0, %s6, %s4
  $region1: #{tpu_custom_call.1} parent=0
    #allocation2 [shape = 'u8[16384]{0}', space=vmem, size = 0x4000, scoped, tag = 'input window, operand 0']
    #allocation3 [shape = 's32[2]{0}', space=sflag, size = 0x8, scoped, tag = 'scoped memory for tpu_custom_call.1']
    #allocation4 [shape = 's32[2]{0}', space=sflag, size = 0x8, scoped, tag = 'scoped memory for tpu_custom_call.1']
    #allocation5 [shape = 'u8[32768]{0}', space=vmem, size = 0x8000, scoped, tag = 'output window, operand 0']
    %8 = vsyncpa [#allocation3], 0
    %s9 = scalar_lea.sflag [#allocation3], 1
    %10 = vsyncpa %s9, 0
    %11 = vsyncpa [#allocation4], 0
    %s12 = scalar_lea.sflag [#allocation4], 1
    %13 = vsyncpa %s12, 0
    loop: start=0, step=1, limit=10
    $region2: #{tpu_custom_call.1} parent=1 // loop_pre_header
      _
    $region3: #{tpu_custom_call.1} parent=1 // loop_header
      %s15 = sphi 0, %s19
      %p16 = scmp.ge.s32.totalorder %s15, 10
      %s22 = sphi 0, %s34
      %s23 = sphi 0, %s30
      %s24 = sphi 0, %s22
      %s25 = sphi 0, %s23
      %s26 = sphi 0, %s24
      %s27 = sphi 0, %s25
      %s39 = sphi 0, %s41
      %s42 = sphi 0, %s39
      %s43 = sphi 0, %s42
      %s59 = sphi 0, %s43
      %s63 = sphi 0, %s63
      %s65 = sphi 0, %s63
      %s66 = sphi 0, %s65
      %s80 = sphi 0, %s66
      %s84 = sphi 0, %s84
      %s86 = sphi 0, %s84
      %s87 = sphi 0, %s86
      %s101 = sphi 0, %s87
      %s109 = sphi 0, %s111
      %s112 = sphi 0, %s109
      %s113 = sphi 0, %s112
      %s129 = sphi 0, %s113
    $region4: #{tpu_custom_call.1} parent=1 // loop_header_branch
      %18 = sbr.rel (%p16) target = $region8
    $region5: #{tpu_custom_call.1} parent=1 // loop_body
      %s20 = ssub.s32 %s15, 1
      %s21 = ssub.s32 %s15, 2
      %s28 = sadd.s32 1, %s23
      %p29 = scmp.ge.s32.totalorder %s28, 4
      %s30 = scalar_select %p29, 0, %s28
      %s31 = sadd.s32 1, %s22
      %s32 = scalar_select %p29, %s31, %s22
      %p33 = scmp.ge.s32.totalorder %s32, 2
      %s34 = scalar_select %p33, 0, %s32
      %s35 = ssub.s32 %s22, %s34
      %s36 = ssub.s32 %s23, %s30
      %s37 = sor.u32 %s35, %s36
      %p38 = scmp.eq.s32.totalorder %s37, 0
      %s40 = sadd.s32 %s39, 1
      %s41 = scalar_select %p38, %s39, %s40
      %p44 = pneg %p38
      %p45 = scmp.eq.s32.totalorder %s15, 7
      %p46 = por %p44, %p45
      %p47 = scmp.ne.s32.totalorder %s39, %s42
      %p48 = scmp.eq.s32.totalorder %s15, 0
      %p49 = por %p47, %p48
      %p50 = scmp.ne.s32.totalorder %s39, %s42
      %p51 = scmp.eq.s32.totalorder %s20, 7
      %p52 = por %p50, %p51
      %p53 = scmp.ne.s32.totalorder %s42, %s43
      %p54 = scmp.eq.s32.totalorder %s20, 0
      %p55 = por %p53, %p54
      %p56 = scmp.ne.s32.totalorder %s42, %s43
      %p57 = scmp.eq.s32.totalorder %s21, 7
      %p58 = por %p56, %p57
      %p60 = scmp.ne.s32.totalorder %s43, %s59
      %p61 = scmp.eq.s32.totalorder %s21, 0
      %p62 = por %p60, %p61
      %s64 = sadd.s32 %s63, 1
      %p67 = scmp.eq.s32.totalorder %s15, 7
      %p68 = scmp.ne.s32.totalorder %s63, %s65
      %p69 = scmp.eq.s32.totalorder %s15, 0
      %p70 = por %p68, %p69
      %p71 = scmp.ne.s32.totalorder %s63, %s65
      %p72 = scmp.eq.s32.totalorder %s20, 7
      %p73 = por %p71, %p72
      %p74 = scmp.ne.s32.totalorder %s65, %s66
      %p75 = scmp.eq.s32.totalorder %s20, 0
      %p76 = por %p74, %p75
      %p77 = scmp.ne.s32.totalorder %s65, %s66
      %p78 = scmp.eq.s32.totalorder %s21, 7
      %p79 = por %p77, %p78
      %p81 = scmp.ne.s32.totalorder %s66, %s80
      %p82 = scmp.eq.s32.totalorder %s21, 0
      %p83 = por %p81, %p82
      %s85 = sadd.s32 %s84, 1
      %p88 = scmp.eq.s32.totalorder %s15, 7
      %p89 = scmp.ne.s32.totalorder %s84, %s86
      %p90 = scmp.eq.s32.totalorder %s15, 0
      %p91 = por %p89, %p90
      %p92 = scmp.ne.s32.totalorder %s84, %s86
      %p93 = scmp.eq.s32.totalorder %s20, 7
      %p94 = por %p92, %p93
      %p95 = scmp.ne.s32.totalorder %s86, %s87
      %p96 = scmp.eq.s32.totalorder %s20, 0
      %p97 = por %p95, %p96
      %p98 = scmp.ne.s32.totalorder %s86, %s87
      %p99 = scmp.eq.s32.totalorder %s21, 7
      %p100 = por %p98, %p99
      %p102 = scmp.ne.s32.totalorder %s87, %s101
      %p103 = scmp.eq.s32.totalorder %s21, 0
      %p104 = por %p102, %p103
      %s105 = ssub.s32 %s22, %s34
      %s106 = ssub.s32 %s23, %s30
      %s107 = sor.u32 %s105, %s106
      %p108 = scmp.eq.s32.totalorder %s107, 0
      %s110 = sadd.s32 %s109, 1
      %s111 = scalar_select %p108, %s109, %s110
      %p114 = pneg %p108
      %p115 = scmp.eq.s32.totalorder %s15, 7
      %p116 = por %p114, %p115
      %p117 = scmp.ne.s32.totalorder %s109, %s112
      %p118 = scmp.eq.s32.totalorder %s15, 0
      %p119 = por %p117, %p118
      %p120 = scmp.ne.s32.totalorder %s109, %s112
      %p121 = scmp.eq.s32.totalorder %s20, 7
      %p122 = por %p120, %p121
      %p123 = scmp.ne.s32.totalorder %s112, %s113
      %p124 = scmp.eq.s32.totalorder %s20, 0
      %p125 = por %p123, %p124
      %p126 = scmp.ne.s32.totalorder %s112, %s113
      %p127 = scmp.eq.s32.totalorder %s21, 7
      %p128 = por %p126, %p127
      %p130 = scmp.ne.s32.totalorder %s113, %s129
      %p131 = scmp.eq.s32.totalorder %s21, 0
      %p132 = por %p130, %p131
      %p133 = scmp.le.s32.totalorder 1, %s15
      %p134 = scmp.lt.s32.totalorder %s15, 9
      %p135 = pnand %p133, %p134
      %p136 = pneg %p135
      // Predicated region
      $region9: #{tpu_custom_call.1} parent=5 // pred_check
        _
      $region10: #{tpu_custom_call.1} parent=5 // pred_check_branch
        %138 = sbr.rel (%p135) target = $region12
      $region11: #{tpu_custom_call.1} parent=5 // pred_region
        %s139 = ssub.s32 %s15, 1
        // Predicated region
        $region13: #{tpu_custom_call.1} parent=11 // pred_check
          %p140 = pneg %p76
        $region14: #{tpu_custom_call.1} parent=11 // pred_check_branch
          %142 = sbr.rel (%p140) target = $region16
        $region15: #{tpu_custom_call.1} parent=11 // pred_region
          _
        $region16: #{tpu_custom_call.1} parent=11 // pred_fallthru
          _
        // Predicated region
        $region17: #{tpu_custom_call.1} parent=11 // pred_check
          %p143 = pneg %p97
        $region18: #{tpu_custom_call.1} parent=11 // pred_check_branch
          %145 = sbr.rel (%p143) target = $region20
        $region19: #{tpu_custom_call.1} parent=11 // pred_region
          _
        $region20: #{tpu_custom_call.1} parent=11 // pred_fallthru
          _
      $region12: #{tpu_custom_call.1} parent=5 // pred_fallthru
        _
      %p146 = scmp.lt.s32.totalorder %s15, 8
      // Predicated region
      $region21: #{tpu_custom_call.1} parent=5 // pred_check
        %p147 = pneg %p146
      $region22: #{tpu_custom_call.1} parent=5 // pred_check_branch
        %149 = sbr.rel (%p147) target = $region24
      $region23: #{tpu_custom_call.1} parent=5 // pred_region
        // Predicated region
        $region25: #{tpu_custom_call.1} parent=23 // pred_check
          %p150 = pneg %p49
        $region26: #{tpu_custom_call.1} parent=23 // pred_check_branch
          %152 = sbr.rel (%p150) target = $region28
        $region27: #{tpu_custom_call.1} parent=23 // pred_region
          %s153 = sand.u32 %s39, 1
          %s154 = scalar_lea.sflag [#allocation3], %s153
          %s155 = sand.u32 %s39, 1
          %s156 = smul.addr %s155, 16
          %s157 = scalar_lea.vmem [#allocation2], %s156
          %s159 = ssub.s32 256, 256
          %160 = vsyncadd %s154, %s159
          %s161 = smul.addr %s23, 2
          %s162 = smul.addr %s22, 8
          %s163 = sadd.s32 %s161, %s162
          %s164 = smul.addr %s163, 128
          %s165 = scalar_lea.hbm %s0, %s164
          %s166 = sshll.u32 %s157, 4
          %s167 = int_to_ptr.vmem [resolvable:$true] %s166
          %172 = dma.hbm_to_vmem [thread:$0]  %s165, 256, %s167, %s154, 128, 128, 8
        $region28: #{tpu_custom_call.1} parent=23 // pred_fallthru
          _
      $region24: #{tpu_custom_call.1} parent=5 // pred_fallthru
        _
      %p173 = scmp.le.s32.totalorder 1, %s15
      %p174 = scmp.lt.s32.totalorder %s15, 9
      %p175 = pnand %p173, %p174
      %p176 = pneg %p175
      // Predicated region
      $region29: #{tpu_custom_call.1} parent=5 // pred_check
        _
      $region30: #{tpu_custom_call.1} parent=5 // pred_check_branch
        %178 = sbr.rel (%p175) target = $region32
      $region31: #{tpu_custom_call.1} parent=5 // pred_region
        %s179 = ssub.s32 %s15, 1
        %s180 = sand.u32 %s42, 1
        %s181 = scalar_lea.sflag [#allocation3], %s180
        %s182 = sand.u32 %s42, 1
        %s183 = smul.addr %s182, 16
        %s184 = scalar_lea.vmem [#allocation2], %s183
        // Predicated region
        $region33: #{tpu_custom_call.1} parent=31 // pred_check
          %p185 = pneg %p55
        $region34: #{tpu_custom_call.1} parent=31 // pred_check_branch
          %187 = sbr.rel (%p185) target = $region36
        $region35: #{tpu_custom_call.1} parent=31 // pred_region
          %188 = dma.done %s181, 256
        $region36: #{tpu_custom_call.1} parent=31 // pred_fallthru
          _
        %s189 = sand.u32 %s42, 1
        %s190 = scalar_lea.sflag [#allocation3], %s189
        %s191 = sand.u32 %s42, 1
        %s192 = smul.addr %s191, 16
        %s193 = scalar_lea.vmem [#allocation2], %s192
        %p194 = pneg %p55
        %p195 = pneg %p52
        %p196 = pneg %p76
        %p197 = pneg %p73
        %p198 = pneg %p97
        %p199 = pneg %p94
        %p200 = pneg %p125
        %p201 = pneg %p122
        %s202 = sand.u32 %s112, 1
        %s203 = scalar_lea.sflag [#allocation4], %s202
        %s204 = sand.u32 %s112, 1
        %s205 = smul.addr %s204, 32
        %s206 = scalar_lea.vmem [#allocation5], %s205
        %v207 = vld [vmem:[%s184] sm:$0xff]
        %v208 = vld [vmem:[%s184 + $0x8] sm:$0xff]
        %v209 = vld [vmem:[%s2] sm:$0xff]
        %v210 = vld [vmem:[%s2 + $0x8] sm:$0xff]
        %vm211 = vcmask 130048
        %v213 = vsel %vm211, %v207, 0
        %v216 = vsel %vm211, %v208, 0
        %218 = vmatprep.subr.mxu0 0.0
        %219 = vmatpush1.msra.mxu0 %v209
        %220 = vmatprep.subr.mxu0 0.0
        %221 = vmatpush1.msra.mxu0 %v210
        %222 = vmatprep.subr.mxu0 0.0
        %223 = vmatpush1.msra.mxu0 0.0
        %224 = vmatprep.subr.mxu0 0.0
        %225 = vmatpush1.msra.mxu0 0.0
        %226 = vmatprep.subr.mxu0 0.0
        %227 = vmatpush1.msra.mxu0 0.0
        %228 = vmatprep.subr.mxu0 0.0
        %229 = vmatpush1.msra.mxu0 0.0
        %230 = vmatprep.subr.mxu0 0.0
        %231 = vmatpush1.msra.mxu0 0.0
        %232 = vmatprep.subr.mxu0 0.0
        %233 = vmatpush1.msra.mxu0 0.0
        %234 = vmatprep.subr.mxu0 0.0
        %235 = vmatpush1.msra.mxu0 0.0
        %236 = vmatprep.subr.mxu0 0.0
        %237 = vmatpush1.msra.mxu0 0.0
        %238 = vmatprep.subr.mxu0 0.0
        %239 = vmatpush1.msra.mxu0 0.0
        %240 = vmatprep.subr.mxu0 0.0
        %241 = vmatpush1.msra.mxu0 0.0
        %242 = vmatprep.subr.mxu0 0.0
        %243 = vmatpush1.msra.mxu0 0.0
        %244 = vmatprep.subr.mxu0 0.0
        %245 = vmatpush1.msra.mxu0 0.0
        %246 = vmatprep.subr.mxu0 0.0
        %247 = vmatpush1.msra.mxu0 0.0
        %248 = vmatprep.subr.mxu0 0.0
        %249 = vmatpush1.msra.mxu0 0.0
        %250 = vmatprep.subr.mxu0 0.0
        %251 = vmatpush1.msra.mxu0 0.0
        %252 = vmatprep.subr.mxu0 0.0
        %253 = vmatpush1.msra.mxu0 0.0
        %254 = vmatprep.subr.mxu0 0.0
        %255 = vmatpush1.msra.mxu0 0.0
        %256 = vmatprep.subr.mxu0 0.0
        %257 = vmatpush1.msra.mxu0 0.0
        %258 = vmatprep.subr.mxu0 0.0
        %259 = vmatpush1.msra.mxu0 0.0
        %260 = vmatprep.subr.mxu0 0.0
        %261 = vmatpush1.msra.mxu0 0.0
        %262 = vmatprep.subr.mxu0 0.0
        %263 = vmatpush1.msra.mxu0 0.0
        %264 = vmatprep.subr.mxu0 0.0
        %265 = vmatpush1.msra.mxu0 0.0
        %266 = vmatprep.subr.mxu0 0.0
        %267 = vmatpush1.msra.mxu0 0.0
        %268 = vmatprep.subr.mxu0 0.0
        %269 = vmatpush1.msra.mxu0 0.0
        %270 = vmatprep.subr.mxu0 0.0
        %271 = vmatpush1.msra.mxu0 0.0
        %272 = vmatprep.subr.mxu0 0.0
        %273 = vmatpush1.msra.mxu0 0.0
        %274 = vmatprep.subr.mxu0 0.0
        %275 = vmatpush1.msra.mxu0 0.0
        %276 = vmatprep.subr.mxu0 0.0
        %277 = vmatpush1.msra.mxu0 0.0
        %278 = vmatprep.subr.mxu0 0.0
        %279 = vmatpush1.msra.mxu0 0.0
        %280 = vmatprep.subr.mxu0 0.0
        %281 = vmatpush1.msra.mxu0 0.0
        %282 = vmatprep.mubr.f32.mxu0 0.0
        %283 = vmatmul.mubr.f32.gmra.mrb[0].mxu0 %v213
        %v284 = vpop.f32.mrb[0].mxu0
        %v285 = vadd.f32 0.0, %v284
        %v286 = vpop.f32.mrb[0].mxu0
        %287 = vmatprep.mubr.f32.mxu0 0.0
        %288 = vmatmul.mubr.f32.gmra.mrb[0].mxu0 %v216
        %v289 = vpop.f32.mrb[0].mxu0
        %v290 = vadd.f32 0.0, %v289
        %v291 = vpop.f32.mrb[0].mxu0
        %292 = vdwg.mxu0
        %v293 = vld [vmem:[%s1] sm:$0xff]
        %v294 = vld [vmem:[%s1 + $0x8] sm:$0xff]
        %v295 = vld [vmem:[%s1 + $0x10] sm:$0xff]
        %v296 = vld [vmem:[%s1 + $0x18] sm:$0xff]
        %v298 = vsel %vm211, %v293, 0
        %v301 = vsel %vm211, %v294, 0
        %v304 = vsel %vm211, %v295, 0
        %v307 = vsel %vm211, %v296, 0
        %309 = vmatprep.subr.mxu0 0.0
        %310 = vmatpush1.msra.mxu0 %v285
        %311 = vmatprep.subr.mxu0 0.0
        %312 = vmatpush1.msra.mxu0 %v290
        %313 = vmatprep.subr.mxu0 0.0
        %314 = vmatpush1.msra.mxu0 0.0
        %315 = vmatprep.subr.mxu0 0.0
        %316 = vmatpush1.msra.mxu0 0.0
        %317 = vmatprep.subr.mxu0 0.0
        %318 = vmatpush1.msra.mxu0 0.0
        %319 = vmatprep.subr.mxu0 0.0
        %320 = vmatpush1.msra.mxu0 0.0
        %321 = vmatprep.subr.mxu0 0.0
        %322 = vmatpush1.msra.mxu0 0.0
        %323 = vmatprep.subr.mxu0 0.0
        %324 = vmatpush1.msra.mxu0 0.0
        %325 = vmatprep.subr.mxu0 0.0
        %326 = vmatpush1.msra.mxu0 0.0
        %327 = vmatprep.subr.mxu0 0.0
        %328 = vmatpush1.msra.mxu0 0.0
        %329 = vmatprep.subr.mxu0 0.0
        %330 = vmatpush1.msra.mxu0 0.0
        %331 = vmatprep.subr.mxu0 0.0
        %332 = vmatpush1.msra.mxu0 0.0
        %333 = vmatprep.subr.mxu0 0.0
        %334 = vmatpush1.msra.mxu0 0.0
        %335 = vmatprep.subr.mxu0 0.0
        %336 = vmatpush1.msra.mxu0 0.0
        %337 = vmatprep.subr.mxu0 0.0
        %338 = vmatpush1.msra.mxu0 0.0
        %339 = vmatprep.subr.mxu0 0.0
        %340 = vmatpush1.msra.mxu0 0.0
        %341 = vmatprep.subr.mxu0 0.0
        %342 = vmatpush1.msra.mxu0 0.0
        %343 = vmatprep.subr.mxu0 0.0
        %344 = vmatpush1.msra.mxu0 0.0
        %345 = vmatprep.subr.mxu0 0.0
        %346 = vmatpush1.msra.mxu0 0.0
        %347 = vmatprep.subr.mxu0 0.0
        %348 = vmatpush1.msra.mxu0 0.0
        %349 = vmatprep.subr.mxu0 0.0
        %350 = vmatpush1.msra.mxu0 0.0
        %351 = vmatprep.subr.mxu0 0.0
        %352 = vmatpush1.msra.mxu0 0.0
        %353 = vmatprep.subr.mxu0 0.0
        %354 = vmatpush1.msra.mxu0 0.0
        %355 = vmatprep.subr.mxu0 0.0
        %356 = vmatpush1.msra.mxu0 0.0
        %357 = vmatprep.subr.mxu0 0.0
        %358 = vmatpush1.msra.mxu0 0.0
        %359 = vmatprep.subr.mxu0 0.0
        %360 = vmatpush1.msra.mxu0 0.0
        %361 = vmatprep.subr.mxu0 0.0
        %362 = vmatpush1.msra.mxu0 0.0
        %363 = vmatprep.subr.mxu0 0.0
        %364 = vmatpush1.msra.mxu0 0.0
        %365 = vmatprep.subr.mxu0 0.0
        %366 = vmatpush1.msra.mxu0 0.0
        %367 = vmatprep.subr.mxu0 0.0
        %368 = vmatpush1.msra.mxu0 0.0
        %369 = vmatprep.subr.mxu0 0.0
        %370 = vmatpush1.msra.mxu0 0.0
        %371 = vmatprep.subr.mxu0 0.0
        %372 = vmatpush1.msra.mxu0 0.0
        %373 = vmatprep.mubr.f32.mxu0 0.0
        %374 = vmatmul.mubr.f32.gmra.mrb[0].mxu0 %v298
        %v375 = vpop.f32.mrb[0].mxu0
        %v376 = vadd.f32 0.0, %v375
        %v377 = vpop.f32.mrb[0].mxu0
        %378 = vmatprep.mubr.f32.mxu0 0.0
        %379 = vmatmul.mubr.f32.gmra.mrb[0].mxu0 %v301
        %v380 = vpop.f32.mrb[0].mxu0
        %v381 = vadd.f32 0.0, %v380
        %v382 = vpop.f32.mrb[0].mxu0
        %383 = vmatprep.mubr.f32.mxu0 0.0
        %384 = vmatmul.mubr.f32.gmra.mrb[0].mxu0 %v304
        %v385 = vpop.f32.mrb[0].mxu0
        %v386 = vadd.f32 0.0, %v385
        %v387 = vpop.f32.mrb[0].mxu0
        %388 = vmatprep.mubr.f32.mxu0 0.0
        %389 = vmatmul.mubr.f32.gmra.mrb[0].mxu0 %v307
        %v390 = vpop.f32.mrb[0].mxu0
        %v391 = vadd.f32 0.0, %v390
        %v392 = vpop.f32.mrb[0].mxu0
        %393 = vdwg.mxu0
        %vm394 = vcmask 261120
        %395 = vst.msk [vmem:[%s206] sm:$0xff] %vm394, %v376
        %396 = vst.msk [vmem:[%s206 + $0x8] sm:$0xff] %vm394, %v381
        %397 = vst.msk [vmem:[%s206 + $0x10] sm:$0xff] %vm394, %v386
        %398 = vst.msk [vmem:[%s206 + $0x18] sm:$0xff] %vm394, %v391
        %s399 = sand.u32 %s112, 1
        %s400 = scalar_lea.sflag [#allocation4], %s399
        %s401 = sand.u32 %s112, 1
        %s402 = smul.addr %s401, 32
        %s403 = scalar_lea.vmem [#allocation5], %s402
        // Predicated region
        $region37: #{tpu_custom_call.1} parent=31 // pred_check
          %p404 = pneg %p122
        $region38: #{tpu_custom_call.1} parent=31 // pred_check_branch
          %406 = sbr.rel (%p404) target = $region40
        $region39: #{tpu_custom_call.1} parent=31 // pred_region
          %s408 = ssub.s32 512, 512
          %409 = vsyncadd %s400, %s408
          %s410 = smul.addr %s25, 4
          %s411 = smul.addr %s24, 16
          %s412 = sadd.s32 %s410, %s411
          %s413 = smul.addr %s412, 128
          %s414 = scalar_lea.hbm %s3, %s413
          %s415 = sshll.u32 %s403, 4
          %s416 = int_to_ptr.vmem [resolvable:$true] %s415
          %421 = dma.vmem_to_hbm [thread:$0]  %s416, 512, %s414, %s400, 128, 128, 8
        $region40: #{tpu_custom_call.1} parent=31 // pred_fallthru
          _
      $region32: #{tpu_custom_call.1} parent=5 // pred_fallthru
        _
      %p422 = scmp.le.s32.totalorder 2, %s15
      // Predicated region
      $region41: #{tpu_custom_call.1} parent=5 // pred_check
        %p423 = pneg %p422
      $region42: #{tpu_custom_call.1} parent=5 // pred_check_branch
        %425 = sbr.rel (%p423) target = $region44
      $region43: #{tpu_custom_call.1} parent=5 // pred_region
        %s426 = ssub.s32 %s15, 2
        // Predicated region
        $region45: #{tpu_custom_call.1} parent=43 // pred_check
          %p427 = pneg %p128
        $region46: #{tpu_custom_call.1} parent=43 // pred_check_branch
          %429 = sbr.rel (%p427) target = $region48
        $region47: #{tpu_custom_call.1} parent=43 // pred_region
          %s430 = sand.u32 %s113, 1
          %s431 = scalar_lea.sflag [#allocation4], %s430
          %s432 = sand.u32 %s113, 1
          %s433 = smul.addr %s432, 32
          %s434 = scalar_lea.vmem [#allocation5], %s433
          %435 = dma.done %s431, 512
        $region48: #{tpu_custom_call.1} parent=43 // pred_fallthru
          _
      $region44: #{tpu_custom_call.1} parent=5 // pred_fallthru
        _
    $region6: #{tpu_custom_call.1} parent=1 // loop_footer
      %s19 = sadd.s32 1, %s15
    $region7: #{tpu_custom_call.1} parent=1 // loop_footer_branch
      %14 = sbr.rel target = $region3
    $region8: #{tpu_custom_call.1} parent=1 // loop_exit
      _
    %436 = vsyncpa [#allocation3], 1
    %s437 = scalar_lea.sflag [#allocation3], 1
    %438 = vsyncpa %s437, 1
    %439 = vsyncpa [#allocation4], 1
    %s440 = scalar_lea.sflag [#allocation4], 1
    %441 = vsyncpa %s440, 1

</llo_original>
